<compile_context>
chip_gen: v5e
topology: v5e:2x2
jax: 0.10.0
libtpu: 0.0.40
codegen_flags: <defaults>
</compile_context>

<pallas_src>
import numpy as np

import jax
import jax.numpy as jnp
from jax import lax
from jax.experimental import pallas as pl
from jax.experimental.pallas import tpu as pltpu

# --- group definitions (copied from the PyTorch module) -----------------
BODY_IDX = [1, 2, 5, 8, 9, 12]
LEG_IDX = [10, 11, 13, 14, 19, 20, 21, 22, 23, 24]
LHAND_IDX = [5, 6, 7, 29, 33, 37, 41, 45]
RHAND_IDX = [2, 3, 4, 50, 54, 58, 62, 66]
FACE_IDX = [0, 15, 16, 17, 18, 107, 110, 113, 116]

BODY_W = 20.0
HAND_W = 50.0
FACE_W = 20.0
LEG_W = 20.0

GROUPS = [
    (BODY_IDX, BODY_W),
    (LHAND_IDX, HAND_W),
    (RHAND_IDX, HAND_W),
    (FACE_IDX, FACE_W),
    (LEG_IDX, LEG_W),
]

LANE_CHUNK = 128    # inner compute sub-slice (one vreg lane width)
B_TILE_MAX = 1024   # lanes (samples) per grid step; sweepable 1024-4096
SUBLANE = 8         # keypoint axis padded to a multiple of 8


def _round_up(x, m):
    return (x + m - 1) // m * m


def _kp_weight_vector(num_kp):
    """Static per-keypoint weight: sum over groups of group_w / group_size.

    Duplicated indices (e.g. 2 in body+rhand, 5 in body+lhand) simply sum,
    exactly like the PyTorch per-group mean formulation.
    """
    w = np.zeros((num_kp,), np.float32)
    for idx, gw in GROUPS:
        for i in idx:
            w[i] += gw / float(len(idx))
    return w


def _make_kernel(k_pad, b_tile):
    n_chunks = b_tile // LANE_CHUNK

    def kernel(gxy_ref, coef_ref, m_ref, o_ref):
        # gxy_ref:  (2*k_pad, 128)   lane-dense gt_x | gt_y (resident, fetched once)
        # coef_ref: (8, k_pad)       row 0 = conf * folded group weight, rows 1-7 = 0
        # m_ref:    (2*k_pad, b_tile) model_x | model_y, batch on lanes
        # o_ref:    (8, b_tile)      row 0 = per-sample loss
        coef = coef_ref[...]  # tiny (2 vregs), hoisted above the lane loop

        def body(j, carry):
            off = pl.multiple_of(j * LANE_CHUNK, LANE_CHUNK)
            lanes = pl.ds(off, LANE_CHUNK)
            # x phase then y phase keeps the per-chunk live set small enough
            # to stay in vregs (no VMEM spill traffic).
            dx = gxy_ref[0:k_pad, :] - m_ref[0:k_pad, lanes]
            sq = dx * dx
            dy = gxy_ref[k_pad:2 * k_pad, :] - m_ref[k_pad:2 * k_pad, lanes]
            sq = sq + dy * dy
            # Forward only: padded / unselected keypoints have coef == 0, so
            # they contribute 0.
            # TODO(synk): guard sqrt at exactly zero before ever adding a VJP.
            dist = jnp.sqrt(sq)                            # (k_pad, 128)
            # Weighted reduction on the MXU (HIGHEST precision -> exact f32).
            o_ref[:, lanes] = jnp.dot(
                coef, dist,
                precision=lax.Precision.HIGHEST,
                preferred_element_type=jnp.float32)        # (8, 128)
            return carry

        lax.fori_loop(0, n_chunks, body, 0, unroll=True)

    return kernel


@jax.jit
def sith_loss_batched(gt_keypoints, model_keypoints):
    """gt_keypoints: (K, 3) [x, y, conf]; model_keypoints: (B, K, >=2) -> (B,)."""
    gt = gt_keypoints.astype(jnp.float32)
    mk = model_keypoints.astype(jnp.float32)

    num_kp = gt.shape[0]
    batch = mk.shape[0]
    k_pad = _round_up(num_kp, SUBLANE)
    b_tile = min(B_TILE_MAX, _round_up(batch, LANE_CHUNK))
    b_pad = _round_up(batch, b_tile)

    # ---- gt constants: lane-dense, pre-broadcast, fetched once -------------
    gx = jnp.pad(gt[:, 0], (0, k_pad - num_kp))
    gy = jnp.pad(gt[:, 1], (0, k_pad - num_kp))
    gxy = jnp.broadcast_to(jnp.concatenate([gx, gy])[:, None],
                           (2 * k_pad, LANE_CHUNK))

    w_kp = jnp.asarray(_kp_weight_vector(num_kp))            # static numpy
    coef_row = jnp.pad(gt[:, 2] * w_kp, (0, k_pad - num_kp))  # conf * weight
    coef = jnp.zeros((SUBLANE, k_pad), jnp.float32).at[0, :].set(coef_row)

    # ---- model batch: one (2*k_pad, b_pad) slab, batch on lanes ------------
    # TODO(synk): produce this (2, K, B) layout upstream (or fuse the
    # transpose via allow_input_fusion) to remove this extra HBM round trip
    # once the kernel itself is at HBM roofline.
    m_xy = jnp.transpose(mk[:, :, :2], (2, 1, 0))            # (2, K, B)
    m_xy = jnp.pad(m_xy, ((0, 0), (0, k_pad - num_kp), (0, b_pad - batch)))
    m_xy = m_xy.reshape(2 * k_pad, b_pad)

    out = pl.pallas_call(
        _make_kernel(k_pad, b_tile),
        out_shape=jax.ShapeDtypeStruct((SUBLANE, b_pad), jnp.float32),
        grid_spec=pltpu.PrefetchScalarGridSpec(
            num_scalar_prefetch=0,
            grid=(b_pad // b_tile,),
            in_specs=[
                pl.BlockSpec((2 * k_pad, LANE_CHUNK), lambda b: (0, 0)),  # gt x|y
                pl.BlockSpec((SUBLANE, k_pad), lambda b: (0, 0)),         # coef
                pl.BlockSpec((2 * k_pad, b_tile), lambda b: (0, b)),      # model
            ],
            out_specs=pl.BlockSpec((SUBLANE, b_tile), lambda b: (0, b)),
        ),
        compiler_params=pltpu.CompilerParams(
            dimension_semantics=("parallel",)),
    )(gxy, coef, m_xy)
    return out[0, :batch]


@jax.jit
def sith_loss(gt_keypoints, model_keypoints):
    """Single-sample forward matching the PyTorch module (returns a scalar).

    Bypasses the Pallas path: a 128-lane padded launch would be dominated by
    launch/DMA overhead for this ~1k-flop workload, so a dense pure-JAX
    expression with the folded per-keypoint weight is faster and equivalent.
    """
    gt = gt_keypoints.astype(jnp.float32)
    mk = model_keypoints.astype(jnp.float32)
    w = jnp.asarray(_kp_weight_vector(gt.shape[0]))
    d = gt[:, :2] - mk[:, :2]
    dist = jnp.sqrt(jnp.sum(d * d, axis=1))
    return jnp.sum(dist * gt[:, 2] * w)


def sith_loss_ref(gt_keypoints, model_keypoints):
    """Pure-JAX per-group reference mirroring the PyTorch forward (1 sample)."""
    gt = gt_keypoints.astype(jnp.float32)
    mk = model_keypoints.astype(jnp.float32)
    total = jnp.float32(0.0)
    for idx, w in GROUPS:
        ia = jnp.asarray(idx, dtype=jnp.int32)
        diff = gt[ia, :2] - mk[ia, :2]
        dist = jnp.sqrt(jnp.sum(diff * diff, axis=1))
        total = total + jnp.mean(dist * gt[ia, 2]) * w
    return total


if __name__ == "__main__":
    # 137 keypoints (body25 + 2x21 hands + 70 face), cols: x, y, confidence.
    key = jax.random.PRNGKey(0)
    k_gt, k_mk = jax.random.split(key)
    K, B = 137, 4
    gt_keypoints = jax.random.uniform(k_gt, (K, 3), dtype=jnp.float32)
    model_keypoints = jax.random.uniform(k_mk, (B, K, 3), dtype=jnp.float32)

    # Batched kernel path.
    losses = jax.block_until_ready(sith_loss_batched(gt_keypoints, model_keypoints))
    assert losses.shape == (B,)

    # Per-sample pure-JAX reference.
    ref = jnp.stack([sith_loss_ref(gt_keypoints, model_keypoints[b])
                     for b in range(B)])
    ref = jax.block_until_ready(ref)
    assert jnp.allclose(losses, ref, rtol=1e-4, atol=1e-4), (losses, ref)

    # Single-sample API (matches the module's forward signature semantics).
    single = jax.block_until_ready(sith_loss(gt_keypoints, model_keypoints[0]))
    assert jnp.allclose(single, ref[0], rtol=1e-4, atol=1e-4), (single, ref[0])

    print("KERNEL_OK")
</pallas_src>

<mosaic_0001>
module attributes {stable_mosaic.version = 11 : i64} {
  func.func @kernel(%arg0: i32, %arg1: memref<288x128xf32, #tpu.memory_space<vmem>>, %arg2: memref<8x144xf32, #tpu.memory_space<vmem>>, %arg3: memref<288x128xf32, #tpu.memory_space<vmem>>, %arg4: memref<8x128xf32, #tpu.memory_space<vmem>>) attributes {dimension_semantics = [#tpu.dimension_semantics<parallel>], iteration_bounds = array<i64: 1>, scalar_prefetch = 0 : i64, scratch_operands = 0 : i64, tpu.core_type = #tpu.core_type<tc>, window_params = [{pipeline_mode = #tpu.pipeline_mode<synchronous>, transform_indices = @transform_0, window_bounds = array<i64: 288, 128>}, {pipeline_mode = #tpu.pipeline_mode<synchronous>, transform_indices = @transform_1, window_bounds = array<i64: 8, 144>}, {transform_indices = @transform_2, window_bounds = array<i64: 288, 128>}, {transform_indices = @transform_3, window_bounds = array<i64: 8, 128>}]} {
    %c0 = arith.constant 0 : index
    %c0_0 = arith.constant 0 : index
    %0 = vector.load %arg2[%c0, %c0_0] : memref<8x144xf32, #tpu.memory_space<vmem>>, vector<8x144xf32>
    %c0_i32 = arith.constant 0 : i32
    %c128_i32 = arith.constant 128 : i32
    %1 = arith.muli %c0_i32, %c128_i32 : i32
    %2 = tpu.assume_multiple %1, 128 : i32
    %c0_1 = arith.constant 0 : index
    %c0_2 = arith.constant 0 : index
    %3 = vector.load %arg1[%c0_1, %c0_2] : memref<288x128xf32, #tpu.memory_space<vmem>>, vector<144x128xf32>
    %c0_3 = arith.constant 0 : index
    %4 = arith.index_cast %2 : i32 to index
    %5 = vector.load %arg3[%c0_3, %4] : memref<288x128xf32, #tpu.memory_space<vmem>>, vector<144x128xf32>
    %6 = arith.subf %3, %5 : vector<144x128xf32>
    %7 = arith.mulf %6, %6 : vector<144x128xf32>
    %c144 = arith.constant 144 : index
    %c0_4 = arith.constant 0 : index
    %8 = vector.load %arg1[%c144, %c0_4] : memref<288x128xf32, #tpu.memory_space<vmem>>, vector<144x128xf32>
    %c144_5 = arith.constant 144 : index
    %9 = arith.index_cast %2 : i32 to index
    %10 = vector.load %arg3[%c144_5, %9] : memref<288x128xf32, #tpu.memory_space<vmem>>, vector<144x128xf32>
    %11 = arith.subf %8, %10 : vector<144x128xf32>
    %12 = arith.mulf %11, %11 : vector<144x128xf32>
    %13 = arith.addf %7, %12 : vector<144x128xf32>
    %14 = math.sqrt %13 : vector<144x128xf32>
    %cst = arith.constant dense<0.000000e+00> : vector<8x128xf32>
    %15 = tpu.matmul %0, %14, %cst {dimension_numbers = #tpu.dot_dimension_numbers<[1], [0], [0], [1], [0, 0, 1, 1], [], []>, precision = #tpu.contract_precision<fp32>} : vector<8x144xf32>, vector<144x128xf32>, vector<8x128xf32> -> vector<8x128xf32>
    %c0_6 = arith.constant 0 : index
    %16 = arith.index_cast %2 : i32 to index
    %17 = vector.load %arg4[%c0_6, %16] : memref<8x128xf32, #tpu.memory_space<vmem>>, vector<8x128xf32>
    tpu.vector_store %arg4[%c0_6, %16], %15 {strides = array<i32>} : memref<8x128xf32, #tpu.memory_space<vmem>>, vector<8x128xf32>,
    %c1_i32 = arith.constant 1 : i32
    return
  }
  func.func @transform_0(%arg0: i32) -> (i32, i32) {
    %c0_i32 = arith.constant 0 : i32
    %c0_i32_0 = arith.constant 0 : i32
    %c0_i32_1 = arith.constant 0 : i32
    return %c0_i32, %c0_i32_0 : i32, i32
  }
  func.func @transform_1(%arg0: i32) -> (i32, i32) {
    %c0_i32 = arith.constant 0 : i32
    %c0_i32_0 = arith.constant 0 : i32
    %c0_i32_1 = arith.constant 0 : i32
    return %c0_i32, %c0_i32_0 : i32, i32
  }
  func.func @transform_2(%arg0: i32) -> (i32, i32) {
    %c0_i32 = arith.constant 0 : i32
    %c0_i32_0 = arith.constant 0 : i32
    return %c0_i32, %arg0 : i32, i32
  }
  func.func @transform_3(%arg0: i32) -> (i32, i32) {
    %c0_i32 = arith.constant 0 : i32
    %c0_i32_0 = arith.constant 0 : i32
    return %c0_i32, %arg0 : i32, i32
  }
}

</mosaic_0001>

<llo_original>
// kernel: sith_loss_batched.1
$region0: #{sith_loss_batched.1}
  #allocation0 [shape = 'u32[]', space=smem, size = 0x4, offset = 0x4, fixed_abs, tag = 'smem constant byte address 0x4 - core index']
  #allocation1 [shape = 'u32[72,128]{1,0:T(1,128)}', space=vmem, size = 0x9000, scoped, tag = 'internal scratch']
  %s0 = inlined_call_operand.vmem [shape: f32[288,128], index: 0, kind: input, shape index: {}]
  %s1 = inlined_call_operand.vmem [shape: f32[8,144], index: 1, kind: input, shape index: {}]
  %s2 = inlined_call_operand.vmem [shape: f32[288,128], index: 2, kind: input, shape index: {}]
  %s3 = inlined_call_operand.vmem [shape: f32[8,128], index: 3, kind: output, shape index: {}]
  %s4 = sld [smem:[#allocation0]]
  $region22: #{sith_loss_batched.1} parent=0
    _
  %s6 = ssub.s32 1, %s4
  %s7 = scalar_select 0, %s6, %s4
  // Predicated region
  $region2: #{sith_loss_batched.1} parent=0 // pred_check
    _
  $region3: #{sith_loss_batched.1} parent=0 // pred_check_branch
    %9 = sbr.rel (0) target = $region5
  $region4: #{sith_loss_batched.1} parent=0 // pred_region
    _
  $region5: #{sith_loss_batched.1} parent=0 // pred_fallthru
    _
  // Predicated region
  $region6: #{sith_loss_batched.1} parent=0 // pred_check
    _
  $region7: #{sith_loss_batched.1} parent=0 // pred_check_branch
    %11 = sbr.rel (0) target = $region9
  $region8: #{sith_loss_batched.1} parent=0 // pred_region
    _
  $region9: #{sith_loss_batched.1} parent=0 // pred_fallthru
    _
  // Predicated region
  $region10: #{sith_loss_batched.1} parent=0 // pred_check
    _
  $region11: #{sith_loss_batched.1} parent=0 // pred_check_branch
    %13 = sbr.rel (0) target = $region13
  $region12: #{sith_loss_batched.1} parent=0 // pred_region
    _
  $region13: #{sith_loss_batched.1} parent=0 // pred_fallthru
    _
  %v14 = vld [vmem:[%s1] sm:$0xff]
  %v15 = vld [vmem:[%s1 + $0x8] sm:$0xff]
  %v16 = vld [vmem:[%s0] sm:$0xff]
  %v17 = vld [vmem:[%s0 + $0x8] sm:$0xff]
  %v18 = vld [vmem:[%s0 + $0x10] sm:$0xff]
  %v19 = vld [vmem:[%s0 + $0x18] sm:$0xff]
  %v20 = vld [vmem:[%s0 + $0x20] sm:$0xff]
  %v21 = vld [vmem:[%s0 + $0x28] sm:$0xff]
  %v22 = vld [vmem:[%s0 + $0x30] sm:$0xff]
  %v23 = vld [vmem:[%s0 + $0x38] sm:$0xff]
  %v24 = vld [vmem:[%s0 + $0x40] sm:$0xff]
  %v25 = vld [vmem:[%s0 + $0x48] sm:$0xff]
  %v26 = vld [vmem:[%s0 + $0x50] sm:$0xff]
  %v27 = vld [vmem:[%s0 + $0x58] sm:$0xff]
  %v28 = vld [vmem:[%s0 + $0x60] sm:$0xff]
  %v29 = vld [vmem:[%s0 + $0x68] sm:$0xff]
  %v30 = vld [vmem:[%s0 + $0x70] sm:$0xff]
  %v31 = vld [vmem:[%s0 + $0x78] sm:$0xff]
  %v32 = vld [vmem:[%s0 + $0x80] sm:$0xff]
  %v33 = vld [vmem:[%s0 + $0x88] sm:$0xff]
  %v34 = vld [vmem:[%s2] sm:$0xff]
  %v35 = vld [vmem:[%s2 + $0x8] sm:$0xff]
  %v36 = vld [vmem:[%s2 + $0x10] sm:$0xff]
  %v37 = vld [vmem:[%s2 + $0x18] sm:$0xff]
  %v38 = vld [vmem:[%s2 + $0x20] sm:$0xff]
  %v39 = vld [vmem:[%s2 + $0x28] sm:$0xff]
  %v40 = vld [vmem:[%s2 + $0x30] sm:$0xff]
  %v41 = vld [vmem:[%s2 + $0x38] sm:$0xff]
  %v42 = vld [vmem:[%s2 + $0x40] sm:$0xff]
  %v43 = vld [vmem:[%s2 + $0x48] sm:$0xff]
  %v44 = vld [vmem:[%s2 + $0x50] sm:$0xff]
  %v45 = vld [vmem:[%s2 + $0x58] sm:$0xff]
  %v46 = vld [vmem:[%s2 + $0x60] sm:$0xff]
  %v47 = vld [vmem:[%s2 + $0x68] sm:$0xff]
  %v48 = vld [vmem:[%s2 + $0x70] sm:$0xff]
  %v49 = vld [vmem:[%s2 + $0x78] sm:$0xff]
  %v50 = vld [vmem:[%s2 + $0x80] sm:$0xff]
  %v51 = vld [vmem:[%s2 + $0x88] sm:$0xff]
  %v52 = vsub.f32 %v16, %v34
  %v53 = vsub.f32 %v17, %v35
  %v54 = vsub.f32 %v18, %v36
  %v55 = vsub.f32 %v19, %v37
  %v56 = vsub.f32 %v20, %v38
  %v57 = vsub.f32 %v21, %v39
  %v58 = vsub.f32 %v22, %v40
  %v59 = vsub.f32 %v23, %v41
  %v60 = vsub.f32 %v24, %v42
  %v61 = vsub.f32 %v25, %v43
  %v62 = vsub.f32 %v26, %v44
  %v63 = vsub.f32 %v27, %v45
  %v64 = vsub.f32 %v28, %v46
  %v65 = vsub.f32 %v29, %v47
  %v66 = vsub.f32 %v30, %v48
  %v67 = vsub.f32 %v31, %v49
  %v68 = vsub.f32 %v32, %v50
  %v69 = vsub.f32 %v33, %v51
  %v70 = vmul.f32 %v52, %v52
  %v71 = vmul.f32 %v53, %v53
  %v72 = vmul.f32 %v54, %v54
  %v73 = vmul.f32 %v55, %v55
  %v74 = vmul.f32 %v56, %v56
  %v75 = vmul.f32 %v57, %v57
  %v76 = vmul.f32 %v58, %v58
  %v77 = vmul.f32 %v59, %v59
  %v78 = vmul.f32 %v60, %v60
  %v79 = vmul.f32 %v61, %v61
  %v80 = vmul.f32 %v62, %v62
  %v81 = vmul.f32 %v63, %v63
  %v82 = vmul.f32 %v64, %v64
  %v83 = vmul.f32 %v65, %v65
  %v84 = vmul.f32 %v66, %v66
  %v85 = vmul.f32 %v67, %v67
  %v86 = vmul.f32 %v68, %v68
  %v87 = vmul.f32 %v69, %v69
  %v88 = vld [vmem:[%s0 + $0x90] sm:$0xff]
  %v89 = vld [vmem:[%s0 + $0x98] sm:$0xff]
  %v90 = vld [vmem:[%s0 + $0xa0] sm:$0xff]
  %v91 = vld [vmem:[%s0 + $0xa8] sm:$0xff]
  %v92 = vld [vmem:[%s0 + $0xb0] sm:$0xff]
  %v93 = vld [vmem:[%s0 + $0xb8] sm:$0xff]
  %v94 = vld [vmem:[%s0 + $0xc0] sm:$0xff]
  %v95 = vld [vmem:[%s0 + $0xc8] sm:$0xff]
  %v96 = vld [vmem:[%s0 + $0xd0] sm:$0xff]
  %v97 = vld [vmem:[%s0 + $0xd8] sm:$0xff]
  %v98 = vld [vmem:[%s0 + $0xe0] sm:$0xff]
  %v99 = vld [vmem:[%s0 + $0xe8] sm:$0xff]
  %v100 = vld [vmem:[%s0 + $0xf0] sm:$0xff]
  %v101 = vld [vmem:[%s0 + $0xf8] sm:$0xff]
  %v102 = vld [vmem:[%s0 + $0x100] sm:$0xff]
  %v103 = vld [vmem:[%s0 + $0x108] sm:$0xff]
  %v104 = vld [vmem:[%s0 + $0x110] sm:$0xff]
  %v105 = vld [vmem:[%s0 + $0x118] sm:$0xff]
  %v106 = vld [vmem:[%s2 + $0x90] sm:$0xff]
  %v107 = vld [vmem:[%s2 + $0x98] sm:$0xff]
  %v108 = vld [vmem:[%s2 + $0xa0] sm:$0xff]
  %v109 = vld [vmem:[%s2 + $0xa8] sm:$0xff]
  %v110 = vld [vmem:[%s2 + $0xb0] sm:$0xff]
  %v111 = vld [vmem:[%s2 + $0xb8] sm:$0xff]
  %v112 = vld [vmem:[%s2 + $0xc0] sm:$0xff]
  %v113 = vld [vmem:[%s2 + $0xc8] sm:$0xff]
  %v114 = vld [vmem:[%s2 + $0xd0] sm:$0xff]
  %v115 = vld [vmem:[%s2 + $0xd8] sm:$0xff]
  %v116 = vld [vmem:[%s2 + $0xe0] sm:$0xff]
  %v117 = vld [vmem:[%s2 + $0xe8] sm:$0xff]
  %v118 = vld [vmem:[%s2 + $0xf0] sm:$0xff]
  %v119 = vld [vmem:[%s2 + $0xf8] sm:$0xff]
  %v120 = vld [vmem:[%s2 + $0x100] sm:$0xff]
  %v121 = vld [vmem:[%s2 + $0x108] sm:$0xff]
  %v122 = vld [vmem:[%s2 + $0x110] sm:$0xff]
  %v123 = vld [vmem:[%s2 + $0x118] sm:$0xff]
  %v124 = vsub.f32 %v88, %v106
  %v125 = vsub.f32 %v89, %v107
  %v126 = vsub.f32 %v90, %v108
  %v127 = vsub.f32 %v91, %v109
  %v128 = vsub.f32 %v92, %v110
  %v129 = vsub.f32 %v93, %v111
  %v130 = vsub.f32 %v94, %v112
  %v131 = vsub.f32 %v95, %v113
  %v132 = vsub.f32 %v96, %v114
  %v133 = vsub.f32 %v97, %v115
  %v134 = vsub.f32 %v98, %v116
  %v135 = vsub.f32 %v99, %v117
  %v136 = vsub.f32 %v100, %v118
  %v137 = vsub.f32 %v101, %v119
  %v138 = vsub.f32 %v102, %v120
  %v139 = vsub.f32 %v103, %v121
  %v140 = vsub.f32 %v104, %v122
  %v141 = vsub.f32 %v105, %v123
  %v142 = vmul.f32 %v124, %v124
  %v143 = vmul.f32 %v125, %v125
  %v144 = vmul.f32 %v126, %v126
  %v145 = vmul.f32 %v127, %v127
  %v146 = vmul.f32 %v128, %v128
  %v147 = vmul.f32 %v129, %v129
  %v148 = vmul.f32 %v130, %v130
  %v149 = vmul.f32 %v131, %v131
  %v150 = vmul.f32 %v132, %v132
  %v151 = vmul.f32 %v133, %v133
  %v152 = vmul.f32 %v134, %v134
  %v153 = vmul.f32 %v135, %v135
  %v154 = vmul.f32 %v136, %v136
  %v155 = vmul.f32 %v137, %v137
  %v156 = vmul.f32 %v138, %v138
  %v157 = vmul.f32 %v139, %v139
  %v158 = vmul.f32 %v140, %v140
  %v159 = vmul.f32 %v141, %v141
  %v160 = vadd.f32 %v70, %v142
  %v161 = vadd.f32 %v71, %v143
  %v162 = vadd.f32 %v72, %v144
  %v163 = vadd.f32 %v73, %v145
  %v164 = vadd.f32 %v74, %v146
  %v165 = vadd.f32 %v75, %v147
  %v166 = vadd.f32 %v76, %v148
  %v167 = vadd.f32 %v77, %v149
  %v168 = vadd.f32 %v78, %v150
  %v169 = vadd.f32 %v79, %v151
  %v170 = vadd.f32 %v80, %v152
  %v171 = vadd.f32 %v81, %v153
  %v172 = vadd.f32 %v82, %v154
  %v173 = vadd.f32 %v83, %v155
  %v174 = vadd.f32 %v84, %v156
  %v175 = vadd.f32 %v85, %v157
  %v176 = vadd.f32 %v86, %v158
  %v177 = vadd.f32 %v87, %v159
  %v178 = vrsqrt.pop %v160
  %v179 = vmul.f32 %v178, %v160
  %v180 = vmul.f32 %v179, %v178
  %v181 = vmul.f32 0.5, %v180
  %v182 = vsub.f32 1.5, %v181
  %v183 = vmul.f32 %v178, %v182
  %v184 = vmul.f32 %v160, %v183
  %vm185 = vcmp.eq.f32.partialorder %v160, inf
  %v186 = vsel %vm185, %v160, %v184
  %vm187 = vcmp.eq.f32.partialorder %v160, 0.0
  %v188 = vand.u32 %v160, 2147483648
  %v189 = vsel %vm187, %v188, %v186
  %v190 = vrsqrt.pop %v161
  %v191 = vmul.f32 %v190, %v161
  %v192 = vmul.f32 %v191, %v190
  %v193 = vmul.f32 0.5, %v192
  %v194 = vsub.f32 1.5, %v193
  %v195 = vmul.f32 %v190, %v194
  %v196 = vmul.f32 %v161, %v195
  %vm197 = vcmp.eq.f32.partialorder %v161, inf
  %v198 = vsel %vm197, %v161, %v196
  %vm199 = vcmp.eq.f32.partialorder %v161, 0.0
  %v200 = vand.u32 %v161, 2147483648
  %v201 = vsel %vm199, %v200, %v198
  %v202 = vrsqrt.pop %v162
  %v203 = vmul.f32 %v202, %v162
  %v204 = vmul.f32 %v203, %v202
  %v205 = vmul.f32 0.5, %v204
  %v206 = vsub.f32 1.5, %v205
  %v207 = vmul.f32 %v202, %v206
  %v208 = vmul.f32 %v162, %v207
  %vm209 = vcmp.eq.f32.partialorder %v162, inf
  %v210 = vsel %vm209, %v162, %v208
  %vm211 = vcmp.eq.f32.partialorder %v162, 0.0
  %v212 = vand.u32 %v162, 2147483648
  %v213 = vsel %vm211, %v212, %v210
  %v214 = vrsqrt.pop %v163
  %v215 = vmul.f32 %v214, %v163
  %v216 = vmul.f32 %v215, %v214
  %v217 = vmul.f32 0.5, %v216
  %v218 = vsub.f32 1.5, %v217
  %v219 = vmul.f32 %v214, %v218
  %v220 = vmul.f32 %v163, %v219
  %vm221 = vcmp.eq.f32.partialorder %v163, inf
  %v222 = vsel %vm221, %v163, %v220
  %vm223 = vcmp.eq.f32.partialorder %v163, 0.0
  %v224 = vand.u32 %v163, 2147483648
  %v225 = vsel %vm223, %v224, %v222
  %v226 = vrsqrt.pop %v164
  %v227 = vmul.f32 %v226, %v164
  %v228 = vmul.f32 %v227, %v226
  %v229 = vmul.f32 0.5, %v228
  %v230 = vsub.f32 1.5, %v229
  %v231 = vmul.f32 %v226, %v230
  %v232 = vmul.f32 %v164, %v231
  %vm233 = vcmp.eq.f32.partialorder %v164, inf
  %v234 = vsel %vm233, %v164, %v232
  %vm235 = vcmp.eq.f32.partialorder %v164, 0.0
  %v236 = vand.u32 %v164, 2147483648
  %v237 = vsel %vm235, %v236, %v234
  %v238 = vrsqrt.pop %v165
  %v239 = vmul.f32 %v238, %v165
  %v240 = vmul.f32 %v239, %v238
  %v241 = vmul.f32 0.5, %v240
  %v242 = vsub.f32 1.5, %v241
  %v243 = vmul.f32 %v238, %v242
  %v244 = vmul.f32 %v165, %v243
  %vm245 = vcmp.eq.f32.partialorder %v165, inf
  %v246 = vsel %vm245, %v165, %v244
  %vm247 = vcmp.eq.f32.partialorder %v165, 0.0
  %v248 = vand.u32 %v165, 2147483648
  %v249 = vsel %vm247, %v248, %v246
  %v250 = vrsqrt.pop %v166
  %v251 = vmul.f32 %v250, %v166
  %v252 = vmul.f32 %v251, %v250
  %v253 = vmul.f32 0.5, %v252
  %v254 = vsub.f32 1.5, %v253
  %v255 = vmul.f32 %v250, %v254
  %v256 = vmul.f32 %v166, %v255
  %vm257 = vcmp.eq.f32.partialorder %v166, inf
  %v258 = vsel %vm257, %v166, %v256
  %vm259 = vcmp.eq.f32.partialorder %v166, 0.0
  %v260 = vand.u32 %v166, 2147483648
  %v261 = vsel %vm259, %v260, %v258
  %v262 = vrsqrt.pop %v167
  %v263 = vmul.f32 %v262, %v167
  %v264 = vmul.f32 %v263, %v262
  %v265 = vmul.f32 0.5, %v264
  %v266 = vsub.f32 1.5, %v265
  %v267 = vmul.f32 %v262, %v266
  %v268 = vmul.f32 %v167, %v267
  %vm269 = vcmp.eq.f32.partialorder %v167, inf
  %v270 = vsel %vm269, %v167, %v268
  %vm271 = vcmp.eq.f32.partialorder %v167, 0.0
  %v272 = vand.u32 %v167, 2147483648
  %v273 = vsel %vm271, %v272, %v270
  %v274 = vrsqrt.pop %v168
  %v275 = vmul.f32 %v274, %v168
  %v276 = vmul.f32 %v275, %v274
  %v277 = vmul.f32 0.5, %v276
  %v278 = vsub.f32 1.5, %v277
  %v279 = vmul.f32 %v274, %v278
  %v280 = vmul.f32 %v168, %v279
  %vm281 = vcmp.eq.f32.partialorder %v168, inf
  %v282 = vsel %vm281, %v168, %v280
  %vm283 = vcmp.eq.f32.partialorder %v168, 0.0
  %v284 = vand.u32 %v168, 2147483648
  %v285 = vsel %vm283, %v284, %v282
  %v286 = vrsqrt.pop %v169
  %v287 = vmul.f32 %v286, %v169
  %v288 = vmul.f32 %v287, %v286
  %v289 = vmul.f32 0.5, %v288
  %v290 = vsub.f32 1.5, %v289
  %v291 = vmul.f32 %v286, %v290
  %v292 = vmul.f32 %v169, %v291
  %vm293 = vcmp.eq.f32.partialorder %v169, inf
  %v294 = vsel %vm293, %v169, %v292
  %vm295 = vcmp.eq.f32.partialorder %v169, 0.0
  %v296 = vand.u32 %v169, 2147483648
  %v297 = vsel %vm295, %v296, %v294
  %v298 = vrsqrt.pop %v170
  %v299 = vmul.f32 %v298, %v170
  %v300 = vmul.f32 %v299, %v298
  %v301 = vmul.f32 0.5, %v300
  %v302 = vsub.f32 1.5, %v301
  %v303 = vmul.f32 %v298, %v302
  %v304 = vmul.f32 %v170, %v303
  %vm305 = vcmp.eq.f32.partialorder %v170, inf
  %v306 = vsel %vm305, %v170, %v304
  %vm307 = vcmp.eq.f32.partialorder %v170, 0.0
  %v308 = vand.u32 %v170, 2147483648
  %v309 = vsel %vm307, %v308, %v306
  %v310 = vrsqrt.pop %v171
  %v311 = vmul.f32 %v310, %v171
  %v312 = vmul.f32 %v311, %v310
  %v313 = vmul.f32 0.5, %v312
  %v314 = vsub.f32 1.5, %v313
  %v315 = vmul.f32 %v310, %v314
  %v316 = vmul.f32 %v171, %v315
  %vm317 = vcmp.eq.f32.partialorder %v171, inf
  %v318 = vsel %vm317, %v171, %v316
  %vm319 = vcmp.eq.f32.partialorder %v171, 0.0
  %v320 = vand.u32 %v171, 2147483648
  %v321 = vsel %vm319, %v320, %v318
  %v322 = vrsqrt.pop %v172
  %v323 = vmul.f32 %v322, %v172
  %v324 = vmul.f32 %v323, %v322
  %v325 = vmul.f32 0.5, %v324
  %v326 = vsub.f32 1.5, %v325
  %v327 = vmul.f32 %v322, %v326
  %v328 = vmul.f32 %v172, %v327
  %vm329 = vcmp.eq.f32.partialorder %v172, inf
  %v330 = vsel %vm329, %v172, %v328
  %vm331 = vcmp.eq.f32.partialorder %v172, 0.0
  %v332 = vand.u32 %v172, 2147483648
  %v333 = vsel %vm331, %v332, %v330
  %v334 = vrsqrt.pop %v173
  %v335 = vmul.f32 %v334, %v173
  %v336 = vmul.f32 %v335, %v334
  %v337 = vmul.f32 0.5, %v336
  %v338 = vsub.f32 1.5, %v337
  %v339 = vmul.f32 %v334, %v338
  %v340 = vmul.f32 %v173, %v339
  %vm341 = vcmp.eq.f32.partialorder %v173, inf
  %v342 = vsel %vm341, %v173, %v340
  %vm343 = vcmp.eq.f32.partialorder %v173, 0.0
  %v344 = vand.u32 %v173, 2147483648
  %v345 = vsel %vm343, %v344, %v342
  %v346 = vrsqrt.pop %v174
  %v347 = vmul.f32 %v346, %v174
  %v348 = vmul.f32 %v347, %v346
  %v349 = vmul.f32 0.5, %v348
  %v350 = vsub.f32 1.5, %v349
  %v351 = vmul.f32 %v346, %v350
  %v352 = vmul.f32 %v174, %v351
  %vm353 = vcmp.eq.f32.partialorder %v174, inf
  %v354 = vsel %vm353, %v174, %v352
  %vm355 = vcmp.eq.f32.partialorder %v174, 0.0
  %v356 = vand.u32 %v174, 2147483648
  %v357 = vsel %vm355, %v356, %v354
  %v358 = vrsqrt.pop %v175
  %v359 = vmul.f32 %v358, %v175
  %v360 = vmul.f32 %v359, %v358
  %v361 = vmul.f32 0.5, %v360
  %v362 = vsub.f32 1.5, %v361
  %v363 = vmul.f32 %v358, %v362
  %v364 = vmul.f32 %v175, %v363
  %vm365 = vcmp.eq.f32.partialorder %v175, inf
  %v366 = vsel %vm365, %v175, %v364
  %vm367 = vcmp.eq.f32.partialorder %v175, 0.0
  %v368 = vand.u32 %v175, 2147483648
  %v369 = vsel %vm367, %v368, %v366
  %v370 = vrsqrt.pop %v176
  %v371 = vmul.f32 %v370, %v176
  %v372 = vmul.f32 %v371, %v370
  %v373 = vmul.f32 0.5, %v372
  %v374 = vsub.f32 1.5, %v373
  %v375 = vmul.f32 %v370, %v374
  %v376 = vmul.f32 %v176, %v375
  %vm377 = vcmp.eq.f32.partialorder %v176, inf
  %v378 = vsel %vm377, %v176, %v376
  %vm379 = vcmp.eq.f32.partialorder %v176, 0.0
  %v380 = vand.u32 %v176, 2147483648
  %v381 = vsel %vm379, %v380, %v378
  %v382 = vrsqrt.pop %v177
  %v383 = vmul.f32 %v382, %v177
  %v384 = vmul.f32 %v383, %v382
  %v385 = vmul.f32 0.5, %v384
  %v386 = vsub.f32 1.5, %v385
  %v387 = vmul.f32 %v382, %v386
  %v388 = vmul.f32 %v177, %v387
  %vm389 = vcmp.eq.f32.partialorder %v177, inf
  %v390 = vsel %vm389, %v177, %v388
  %vm391 = vcmp.eq.f32.partialorder %v177, 0.0
  %v392 = vand.u32 %v177, 2147483648
  %v393 = vsel %vm391, %v392, %v390
  %vm394 = vcmask 130048
  %v396 = vsel %vm394, %v15, 0
  %v398 = vand.u32 %v369, 4294901760
  %399 = vmatpush.msra.mxu0 %v398
  %v400 = vand.u32 %v357, 4294901760
  %401 = vmatpush.msra.mxu0 %v400
  %v402 = vand.u32 %v345, 4294901760
  %403 = vmatpush.msra.mxu0 %v402
  %v404 = vand.u32 %v333, 4294901760
  %405 = vmatpush.msra.mxu0 %v404
  %v406 = vand.u32 %v321, 4294901760
  %407 = vmatpush.msra.mxu0 %v406
  %v408 = vand.u32 %v309, 4294901760
  %409 = vmatpush.msra.mxu0 %v408
  %v410 = vand.u32 %v297, 4294901760
  %411 = vmatpush.msra.mxu0 %v410
  %v412 = vand.u32 %v285, 4294901760
  %413 = vmatpush.msra.mxu0 %v412
  %v414 = vand.u32 %v273, 4294901760
  %415 = vmatpush.msra.mxu0 %v414
  %v416 = vand.u32 %v261, 4294901760
  %417 = vmatpush.msra.mxu0 %v416
  %v418 = vand.u32 %v249, 4294901760
  %419 = vmatpush.msra.mxu0 %v418
  %v420 = vand.u32 %v237, 4294901760
  %421 = vmatpush.msra.mxu0 %v420
  %v422 = vand.u32 %v225, 4294901760
  %423 = vmatpush.msra.mxu0 %v422
  %v424 = vand.u32 %v213, 4294901760
  %425 = vmatpush.msra.mxu0 %v424
  %v426 = vand.u32 %v201, 4294901760
  %427 = vmatpush.msra.mxu0 %v426
  %v428 = vand.u32 %v189, 4294901760
  %429 = vmatpush.msra.mxu0 %v428
  %v430 = vand.u32 %v14, 4294901760
  %v431 = vsub.f32 %v14, %v430
  %v432 = vand.u32 %v431, 4294901760
  %v433 = vsub.f32 %v431, %v432
  %v434 = vand.u32 %v433, 4294901760
  %435 = vmatmul.f32.gmra.mxu0 %v434
  %v436 = vpop.f32.mrf.mxu0
  %v437 = vadd.f32 0.0, %v436
  %438 = vdwg.mxu0
  %v439 = vand.u32 %v369, 4294901760
  %v440 = vsub.f32 %v369, %v439
  %v441 = vand.u32 %v440, 4294901760
  %v442 = vsub.f32 %v440, %v441
  %v443 = vand.u32 %v442, 4294901760
  %444 = vmatpush.msra.mxu0 %v443
  %v445 = vand.u32 %v357, 4294901760
  %v446 = vsub.f32 %v357, %v445
  %v447 = vand.u32 %v446, 4294901760
  %v448 = vsub.f32 %v446, %v447
  %v449 = vand.u32 %v448, 4294901760
  %450 = vmatpush.msra.mxu0 %v449
  %v451 = vand.u32 %v345, 4294901760
  %v452 = vsub.f32 %v345, %v451
  %v453 = vand.u32 %v452, 4294901760
  %v454 = vsub.f32 %v452, %v453
  %v455 = vand.u32 %v454, 4294901760
  %456 = vmatpush.msra.mxu0 %v455
  %v457 = vand.u32 %v333, 4294901760
  %v458 = vsub.f32 %v333, %v457
  %v459 = vand.u32 %v458, 4294901760
  %v460 = vsub.f32 %v458, %v459
  %v461 = vand.u32 %v460, 4294901760
  %462 = vmatpush.msra.mxu0 %v461
  %v463 = vand.u32 %v321, 4294901760
  %v464 = vsub.f32 %v321, %v463
  %v465 = vand.u32 %v464, 4294901760
  %v466 = vsub.f32 %v464, %v465
  %v467 = vand.u32 %v466, 4294901760
  %468 = vmatpush.msra.mxu0 %v467
  %v469 = vand.u32 %v309, 4294901760
  %v470 = vsub.f32 %v309, %v469
  %v471 = vand.u32 %v470, 4294901760
  %v472 = vsub.f32 %v470, %v471
  %v473 = vand.u32 %v472, 4294901760
  %474 = vmatpush.msra.mxu0 %v473
  %v475 = vand.u32 %v297, 4294901760
  %v476 = vsub.f32 %v297, %v475
  %v477 = vand.u32 %v476, 4294901760
  %v478 = vsub.f32 %v476, %v477
  %v479 = vand.u32 %v478, 4294901760
  %480 = vmatpush.msra.mxu0 %v479
  %v481 = vand.u32 %v285, 4294901760
  %v482 = vsub.f32 %v285, %v481
  %v483 = vand.u32 %v482, 4294901760
  %v484 = vsub.f32 %v482, %v483
  %v485 = vand.u32 %v484, 4294901760
  %486 = vmatpush.msra.mxu0 %v485
  %v487 = vand.u32 %v273, 4294901760
  %v488 = vsub.f32 %v273, %v487
  %v489 = vand.u32 %v488, 4294901760
  %v490 = vsub.f32 %v488, %v489
  %v491 = vand.u32 %v490, 4294901760
  %492 = vmatpush.msra.mxu0 %v491
  %v493 = vand.u32 %v261, 4294901760
  %v494 = vsub.f32 %v261, %v493
  %v495 = vand.u32 %v494, 4294901760
  %v496 = vsub.f32 %v494, %v495
  %v497 = vand.u32 %v496, 4294901760
  %498 = vmatpush.msra.mxu0 %v497
  %v499 = vand.u32 %v249, 4294901760
  %v500 = vsub.f32 %v249, %v499
  %v501 = vand.u32 %v500, 4294901760
  %v502 = vsub.f32 %v500, %v501
  %v503 = vand.u32 %v502, 4294901760
  %504 = vmatpush.msra.mxu0 %v503
  %v505 = vand.u32 %v237, 4294901760
  %v506 = vsub.f32 %v237, %v505
  %v507 = vand.u32 %v506, 4294901760
  %v508 = vsub.f32 %v506, %v507
  %v509 = vand.u32 %v508, 4294901760
  %510 = vmatpush.msra.mxu0 %v509
  %v511 = vand.u32 %v225, 4294901760
  %v512 = vsub.f32 %v225, %v511
  %v513 = vand.u32 %v512, 4294901760
  %v514 = vsub.f32 %v512, %v513
  %v515 = vand.u32 %v514, 4294901760
  %516 = vmatpush.msra.mxu0 %v515
  %v517 = vand.u32 %v213, 4294901760
  %v518 = vsub.f32 %v213, %v517
  %v519 = vand.u32 %v518, 4294901760
  %v520 = vsub.f32 %v518, %v519
  %v521 = vand.u32 %v520, 4294901760
  %522 = vmatpush.msra.mxu0 %v521
  %v523 = vand.u32 %v201, 4294901760
  %v524 = vsub.f32 %v201, %v523
  %v525 = vand.u32 %v524, 4294901760
  %v526 = vsub.f32 %v524, %v525
  %v527 = vand.u32 %v526, 4294901760
  %528 = vmatpush.msra.mxu0 %v527
  %v529 = vand.u32 %v189, 4294901760
  %v530 = vsub.f32 %v189, %v529
  %v531 = vand.u32 %v530, 4294901760
  %v532 = vsub.f32 %v530, %v531
  %v533 = vand.u32 %v532, 4294901760
  %534 = vmatpush.msra.mxu0 %v533
  %v535 = vand.u32 %v14, 4294901760
  %536 = vmatmul.f32.gmra.mxu0 %v535
  %v537 = vpop.f32.mrf.mxu0
  %v538 = vadd.f32 %v437, %v537
  %539 = vdwg.mxu0
  %v540 = vand.u32 %v369, 4294901760
  %v541 = vsub.f32 %v369, %v540
  %542 = vmatpush.msra.mxu0 %v541
  %v543 = vand.u32 %v357, 4294901760
  %v544 = vsub.f32 %v357, %v543
  %545 = vmatpush.msra.mxu0 %v544
  %v546 = vand.u32 %v345, 4294901760
  %v547 = vsub.f32 %v345, %v546
  %548 = vmatpush.msra.mxu0 %v547
  %v549 = vand.u32 %v333, 4294901760
  %v550 = vsub.f32 %v333, %v549
  %551 = vmatpush.msra.mxu0 %v550
  %v552 = vand.u32 %v321, 4294901760
  %v553 = vsub.f32 %v321, %v552
  %554 = vmatpush.msra.mxu0 %v553
  %v555 = vand.u32 %v309, 4294901760
  %v556 = vsub.f32 %v309, %v555
  %557 = vmatpush.msra.mxu0 %v556
  %v558 = vand.u32 %v297, 4294901760
  %v559 = vsub.f32 %v297, %v558
  %560 = vmatpush.msra.mxu0 %v559
  %v561 = vand.u32 %v285, 4294901760
  %v562 = vsub.f32 %v285, %v561
  %563 = vmatpush.msra.mxu0 %v562
  %v564 = vand.u32 %v273, 4294901760
  %v565 = vsub.f32 %v273, %v564
  %566 = vmatpush.msra.mxu0 %v565
  %v567 = vand.u32 %v261, 4294901760
  %v568 = vsub.f32 %v261, %v567
  %569 = vmatpush.msra.mxu0 %v568
  %v570 = vand.u32 %v249, 4294901760
  %v571 = vsub.f32 %v249, %v570
  %572 = vmatpush.msra.mxu0 %v571
  %v573 = vand.u32 %v237, 4294901760
  %v574 = vsub.f32 %v237, %v573
  %575 = vmatpush.msra.mxu0 %v574
  %v576 = vand.u32 %v225, 4294901760
  %v577 = vsub.f32 %v225, %v576
  %578 = vmatpush.msra.mxu0 %v577
  %v579 = vand.u32 %v213, 4294901760
  %v580 = vsub.f32 %v213, %v579
  %581 = vmatpush.msra.mxu0 %v580
  %v582 = vand.u32 %v201, 4294901760
  %v583 = vsub.f32 %v201, %v582
  %584 = vmatpush.msra.mxu0 %v583
  %v585 = vand.u32 %v189, 4294901760
  %v586 = vsub.f32 %v189, %v585
  %587 = vmatpush.msra.mxu0 %v586
  %v588 = vand.u32 %v14, 4294901760
  %v589 = vsub.f32 %v14, %v588
  %590 = vmatmul.f32.gmra.mxu0 %v589
  %v591 = vpop.f32.mrf.mxu0
  %v592 = vadd.f32 %v538, %v591
  %593 = vdwg.mxu0
  %v594 = vand.u32 %v369, 4294901760
  %595 = vmatpush.msra.mxu0 %v594
  %v596 = vand.u32 %v357, 4294901760
  %597 = vmatpush.msra.mxu0 %v596
  %v598 = vand.u32 %v345, 4294901760
  %599 = vmatpush.msra.mxu0 %v598
  %v600 = vand.u32 %v333, 4294901760
  %601 = vmatpush.msra.mxu0 %v600
  %v602 = vand.u32 %v321, 4294901760
  %603 = vmatpush.msra.mxu0 %v602
  %v604 = vand.u32 %v309, 4294901760
  %605 = vmatpush.msra.mxu0 %v604
  %v606 = vand.u32 %v297, 4294901760
  %607 = vmatpush.msra.mxu0 %v606
  %v608 = vand.u32 %v285, 4294901760
  %609 = vmatpush.msra.mxu0 %v608
  %v610 = vand.u32 %v273, 4294901760
  %611 = vmatpush.msra.mxu0 %v610
  %v612 = vand.u32 %v261, 4294901760
  %613 = vmatpush.msra.mxu0 %v612
  %v614 = vand.u32 %v249, 4294901760
  %615 = vmatpush.msra.mxu0 %v614
  %v616 = vand.u32 %v237, 4294901760
  %617 = vmatpush.msra.mxu0 %v616
  %v618 = vand.u32 %v225, 4294901760
  %619 = vmatpush.msra.mxu0 %v618
  %v620 = vand.u32 %v213, 4294901760
  %621 = vmatpush.msra.mxu0 %v620
  %v622 = vand.u32 %v201, 4294901760
  %623 = vmatpush.msra.mxu0 %v622
  %v624 = vand.u32 %v189, 4294901760
  %625 = vmatpush.msra.mxu0 %v624
  %v626 = vand.u32 %v14, 4294901760
  %v627 = vsub.f32 %v14, %v626
  %v628 = vand.u32 %v627, 4294901760
  %629 = vmatmul.f32.gmra.mxu0 %v628
  %v630 = vpop.f32.mrf.mxu0
  %v631 = vadd.f32 %v592, %v630
  %632 = vdwg.mxu0
  %v633 = vand.u32 %v369, 4294901760
  %v634 = vsub.f32 %v369, %v633
  %v635 = vand.u32 %v634, 4294901760
  %636 = vmatpush.msra.mxu0 %v635
  %v637 = vand.u32 %v357, 4294901760
  %v638 = vsub.f32 %v357, %v637
  %v639 = vand.u32 %v638, 4294901760
  %640 = vmatpush.msra.mxu0 %v639
  %v641 = vand.u32 %v345, 4294901760
  %v642 = vsub.f32 %v345, %v641
  %v643 = vand.u32 %v642, 4294901760
  %644 = vmatpush.msra.mxu0 %v643
  %v645 = vand.u32 %v333, 4294901760
  %v646 = vsub.f32 %v333, %v645
  %v647 = vand.u32 %v646, 4294901760
  %648 = vmatpush.msra.mxu0 %v647
  %v649 = vand.u32 %v321, 4294901760
  %v650 = vsub.f32 %v321, %v649
  %v651 = vand.u32 %v650, 4294901760
  %652 = vmatpush.msra.mxu0 %v651
  %v653 = vand.u32 %v309, 4294901760
  %v654 = vsub.f32 %v309, %v653
  %v655 = vand.u32 %v654, 4294901760
  %656 = vmatpush.msra.mxu0 %v655
  %v657 = vand.u32 %v297, 4294901760
  %v658 = vsub.f32 %v297, %v657
  %v659 = vand.u32 %v658, 4294901760
  %660 = vmatpush.msra.mxu0 %v659
  %v661 = vand.u32 %v285, 4294901760
  %v662 = vsub.f32 %v285, %v661
  %v663 = vand.u32 %v662, 4294901760
  %664 = vmatpush.msra.mxu0 %v663
  %v665 = vand.u32 %v273, 4294901760
  %v666 = vsub.f32 %v273, %v665
  %v667 = vand.u32 %v666, 4294901760
  %668 = vmatpush.msra.mxu0 %v667
  %v669 = vand.u32 %v261, 4294901760
  %v670 = vsub.f32 %v261, %v669
  %v671 = vand.u32 %v670, 4294901760
  %672 = vmatpush.msra.mxu0 %v671
  %v673 = vand.u32 %v249, 4294901760
  %v674 = vsub.f32 %v249, %v673
  %v675 = vand.u32 %v674, 4294901760
  %676 = vmatpush.msra.mxu0 %v675
  %v677 = vand.u32 %v237, 4294901760
  %v678 = vsub.f32 %v237, %v677
  %v679 = vand.u32 %v678, 4294901760
  %680 = vmatpush.msra.mxu0 %v679
  %v681 = vand.u32 %v225, 4294901760
  %v682 = vsub.f32 %v225, %v681
  %v683 = vand.u32 %v682, 4294901760
  %684 = vmatpush.msra.mxu0 %v683
  %v685 = vand.u32 %v213, 4294901760
  %v686 = vsub.f32 %v213, %v685
  %v687 = vand.u32 %v686, 4294901760
  %688 = vmatpush.msra.mxu0 %v687
  %v689 = vand.u32 %v201, 4294901760
  %v690 = vsub.f32 %v201, %v689
  %v691 = vand.u32 %v690, 4294901760
  %692 = vmatpush.msra.mxu0 %v691
  %v693 = vand.u32 %v189, 4294901760
  %v694 = vsub.f32 %v189, %v693
  %v695 = vand.u32 %v694, 4294901760
  %696 = vmatpush.msra.mxu0 %v695
  %v697 = vand.u32 %v14, 4294901760
  %698 = vmatmul.f32.gmra.mxu0 %v697
  %v699 = vpop.f32.mrf.mxu0
  %v700 = vadd.f32 %v631, %v699
  %701 = vdwg.mxu0
  %v702 = vand.u32 %v369, 4294901760
  %703 = vmatpush.msra.mxu0 %v702
  %v704 = vand.u32 %v357, 4294901760
  %705 = vmatpush.msra.mxu0 %v704
  %v706 = vand.u32 %v345, 4294901760
  %707 = vmatpush.msra.mxu0 %v706
  %v708 = vand.u32 %v333, 4294901760
  %709 = vmatpush.msra.mxu0 %v708
  %v710 = vand.u32 %v321, 4294901760
  %711 = vmatpush.msra.mxu0 %v710
  %v712 = vand.u32 %v309, 4294901760
  %713 = vmatpush.msra.mxu0 %v712
  %v714 = vand.u32 %v297, 4294901760
  %715 = vmatpush.msra.mxu0 %v714
  %v716 = vand.u32 %v285, 4294901760
  %717 = vmatpush.msra.mxu0 %v716
  %v718 = vand.u32 %v273, 4294901760
  %719 = vmatpush.msra.mxu0 %v718
  %v720 = vand.u32 %v261, 4294901760
  %721 = vmatpush.msra.mxu0 %v720
  %v722 = vand.u32 %v249, 4294901760
  %723 = vmatpush.msra.mxu0 %v722
  %v724 = vand.u32 %v237, 4294901760
  %725 = vmatpush.msra.mxu0 %v724
  %v726 = vand.u32 %v225, 4294901760
  %727 = vmatpush.msra.mxu0 %v726
  %v728 = vand.u32 %v213, 4294901760
  %729 = vmatpush.msra.mxu0 %v728
  %v730 = vand.u32 %v201, 4294901760
  %731 = vmatpush.msra.mxu0 %v730
  %v732 = vand.u32 %v189, 4294901760
  %733 = vmatpush.msra.mxu0 %v732
  %v734 = vand.u32 %v14, 4294901760
  %735 = vmatmul.f32.gmra.mxu0 %v734
  %v736 = vpop.f32.mrf.mxu0
  %v737 = vadd.f32 %v700, %v736
  %738 = vdwg.mxu0
  %739 = vmatpush.msra.mxu0 0.0
  %740 = vmatpush.msra.mxu0 0.0
  %741 = vmatpush.msra.mxu0 0.0
  %742 = vmatpush.msra.mxu0 0.0
  %743 = vmatpush.msra.mxu0 0.0
  %744 = vmatpush.msra.mxu0 0.0
  %745 = vmatpush.msra.mxu0 0.0
  %746 = vmatpush.msra.mxu0 0.0
  %747 = vmatpush.msra.mxu0 0.0
  %748 = vmatpush.msra.mxu0 0.0
  %749 = vmatpush.msra.mxu0 0.0
  %750 = vmatpush.msra.mxu0 0.0
  %751 = vmatpush.msra.mxu0 0.0
  %752 = vmatpush.msra.mxu0 0.0
  %v753 = vand.u32 %v393, 4294901760
  %754 = vmatpush.msra.mxu0 %v753
  %v755 = vand.u32 %v381, 4294901760
  %756 = vmatpush.msra.mxu0 %v755
  %v757 = vand.u32 %v396, 4294901760
  %v758 = vsub.f32 %v396, %v757
  %v759 = vand.u32 %v758, 4294901760
  %v760 = vsub.f32 %v758, %v759
  %v761 = vand.u32 %v760, 4294901760
  %762 = vmatmul.f32.gmra.mxu0 %v761
  %v763 = vpop.f32.mrf.mxu0
  %v764 = vadd.f32 %v737, %v763
  %765 = vdwg.mxu0
  %766 = vmatpush.msra.mxu0 0.0
  %767 = vmatpush.msra.mxu0 0.0
  %768 = vmatpush.msra.mxu0 0.0
  %769 = vmatpush.msra.mxu0 0.0
  %770 = vmatpush.msra.mxu0 0.0
  %771 = vmatpush.msra.mxu0 0.0
  %772 = vmatpush.msra.mxu0 0.0
  %773 = vmatpush.msra.mxu0 0.0
  %774 = vmatpush.msra.mxu0 0.0
  %775 = vmatpush.msra.mxu0 0.0
  %776 = vmatpush.msra.mxu0 0.0
  %777 = vmatpush.msra.mxu0 0.0
  %778 = vmatpush.msra.mxu0 0.0
  %779 = vmatpush.msra.mxu0 0.0
  %v780 = vand.u32 %v393, 4294901760
  %v781 = vsub.f32 %v393, %v780
  %v782 = vand.u32 %v781, 4294901760
  %v783 = vsub.f32 %v781, %v782
  %v784 = vand.u32 %v783, 4294901760
  %785 = vmatpush.msra.mxu0 %v784
  %v786 = vand.u32 %v381, 4294901760
  %v787 = vsub.f32 %v381, %v786
  %v788 = vand.u32 %v787, 4294901760
  %v789 = vsub.f32 %v787, %v788
  %v790 = vand.u32 %v789, 4294901760
  %791 = vmatpush.msra.mxu0 %v790
  %v792 = vand.u32 %v396, 4294901760
  %793 = vmatmul.f32.gmra.mxu0 %v792
  %v794 = vpop.f32.mrf.mxu0
  %v795 = vadd.f32 %v764, %v794
  %796 = vdwg.mxu0
  %797 = vmatpush.msra.mxu0 0.0
  %798 = vmatpush.msra.mxu0 0.0
  %799 = vmatpush.msra.mxu0 0.0
  %800 = vmatpush.msra.mxu0 0.0
  %801 = vmatpush.msra.mxu0 0.0
  %802 = vmatpush.msra.mxu0 0.0
  %803 = vmatpush.msra.mxu0 0.0
  %804 = vmatpush.msra.mxu0 0.0
  %805 = vmatpush.msra.mxu0 0.0
  %806 = vmatpush.msra.mxu0 0.0
  %807 = vmatpush.msra.mxu0 0.0
  %808 = vmatpush.msra.mxu0 0.0
  %809 = vmatpush.msra.mxu0 0.0
  %810 = vmatpush.msra.mxu0 0.0
  %v811 = vand.u32 %v393, 4294901760
  %v812 = vsub.f32 %v393, %v811
  %813 = vmatpush.msra.mxu0 %v812
  %v814 = vand.u32 %v381, 4294901760
  %v815 = vsub.f32 %v381, %v814
  %816 = vmatpush.msra.mxu0 %v815
  %v817 = vand.u32 %v396, 4294901760
  %v818 = vsub.f32 %v396, %v817
  %819 = vmatmul.f32.gmra.mxu0 %v818
  %v820 = vpop.f32.mrf.mxu0
  %v821 = vadd.f32 %v795, %v820
  %822 = vdwg.mxu0
  %823 = vmatpush.msra.mxu0 0.0
  %824 = vmatpush.msra.mxu0 0.0
  %825 = vmatpush.msra.mxu0 0.0
  %826 = vmatpush.msra.mxu0 0.0
  %827 = vmatpush.msra.mxu0 0.0
  %828 = vmatpush.msra.mxu0 0.0
  %829 = vmatpush.msra.mxu0 0.0
  %830 = vmatpush.msra.mxu0 0.0
  %831 = vmatpush.msra.mxu0 0.0
  %832 = vmatpush.msra.mxu0 0.0
  %833 = vmatpush.msra.mxu0 0.0
  %834 = vmatpush.msra.mxu0 0.0
  %835 = vmatpush.msra.mxu0 0.0
  %836 = vmatpush.msra.mxu0 0.0
  %v837 = vand.u32 %v393, 4294901760
  %838 = vmatpush.msra.mxu0 %v837
  %v839 = vand.u32 %v381, 4294901760
  %840 = vmatpush.msra.mxu0 %v839
  %v841 = vand.u32 %v396, 4294901760
  %v842 = vsub.f32 %v396, %v841
  %v843 = vand.u32 %v842, 4294901760
  %844 = vmatmul.f32.gmra.mxu0 %v843
  %v845 = vpop.f32.mrf.mxu0
  %v846 = vadd.f32 %v821, %v845
  %847 = vdwg.mxu0
  %848 = vmatpush.msra.mxu0 0.0
  %849 = vmatpush.msra.mxu0 0.0
  %850 = vmatpush.msra.mxu0 0.0
  %851 = vmatpush.msra.mxu0 0.0
  %852 = vmatpush.msra.mxu0 0.0
  %853 = vmatpush.msra.mxu0 0.0
  %854 = vmatpush.msra.mxu0 0.0
  %855 = vmatpush.msra.mxu0 0.0
  %856 = vmatpush.msra.mxu0 0.0
  %857 = vmatpush.msra.mxu0 0.0
  %858 = vmatpush.msra.mxu0 0.0
  %859 = vmatpush.msra.mxu0 0.0
  %860 = vmatpush.msra.mxu0 0.0
  %861 = vmatpush.msra.mxu0 0.0
  %v862 = vand.u32 %v393, 4294901760
  %v863 = vsub.f32 %v393, %v862
  %v864 = vand.u32 %v863, 4294901760
  %865 = vmatpush.msra.mxu0 %v864
  %v866 = vand.u32 %v381, 4294901760
  %v867 = vsub.f32 %v381, %v866
  %v868 = vand.u32 %v867, 4294901760
  %869 = vmatpush.msra.mxu0 %v868
  %v870 = vand.u32 %v396, 4294901760
  %871 = vmatmul.f32.gmra.mxu0 %v870
  %v872 = vpop.f32.mrf.mxu0
  %v873 = vadd.f32 %v846, %v872
  %874 = vdwg.mxu0
  %875 = vmatpush.msra.mxu0 0.0
  %876 = vmatpush.msra.mxu0 0.0
  %877 = vmatpush.msra.mxu0 0.0
  %878 = vmatpush.msra.mxu0 0.0
  %879 = vmatpush.msra.mxu0 0.0
  %880 = vmatpush.msra.mxu0 0.0
  %881 = vmatpush.msra.mxu0 0.0
  %882 = vmatpush.msra.mxu0 0.0
  %883 = vmatpush.msra.mxu0 0.0
  %884 = vmatpush.msra.mxu0 0.0
  %885 = vmatpush.msra.mxu0 0.0
  %886 = vmatpush.msra.mxu0 0.0
  %887 = vmatpush.msra.mxu0 0.0
  %888 = vmatpush.msra.mxu0 0.0
  %v889 = vand.u32 %v393, 4294901760
  %890 = vmatpush.msra.mxu0 %v889
  %v891 = vand.u32 %v381, 4294901760
  %892 = vmatpush.msra.mxu0 %v891
  %v893 = vand.u32 %v396, 4294901760
  %894 = vmatmul.f32.gmra.mxu0 %v893
  %v895 = vpop.f32.mrf.mxu0
  %v896 = vadd.f32 %v873, %v895
  %897 = vdwg.mxu0
  %898 = vst [vmem:[%s3] sm:$0xff] %v896
  // Predicated region
  $region14: #{sith_loss_batched.1} parent=0 // pred_check
    _
  $region15: #{sith_loss_batched.1} parent=0 // pred_check_branch
    %900 = sbr.rel (0) target = $region17
  $region16: #{sith_loss_batched.1} parent=0 // pred_region
    _
  $region17: #{sith_loss_batched.1} parent=0 // pred_fallthru
    _
  // Predicated region
  $region18: #{sith_loss_batched.1} parent=0 // pred_check
    _
  $region19: #{sith_loss_batched.1} parent=0 // pred_check_branch
    %902 = sbr.rel (0) target = $region21
  $region20: #{sith_loss_batched.1} parent=0 // pred_region
    _
  $region21: #{sith_loss_batched.1} parent=0 // pred_fallthru
    _

</llo_original>
